<compile_context>
chip_gen: v6e
topology: v6e:2x2x1
jax: 0.10.0
libtpu: 0.0.40
codegen_flags: <defaults>
</compile_context>

<pallas_src>
import functools
import math
from typing import List, Tuple, Union

import jax
import jax.numpy as jnp
from jax.experimental import pallas as pl
from jax.experimental.pallas import tpu as pltpu

NUM_LAYERS = 4                      # mirrors the default extract_layers=(1, 2, 3, 4)
_LANE = 512                         # lane-dense slab width (multiple of 128)
_MAX_TILE_ROWS = 512                # rows per block (multiple of 8)
_WHOLE_PATH_MAX_BYTES = 8 * 1024 * 1024   # cap for the no-copy native-shape path


class BaseEncoder:
    """Base class for encoders with a common interface (JAX port)."""

    def __init__(self, extract_layers: Union[Tuple[int], List[int]] = (1, 2, 3, 4)) -> None:
        self.extract_layers = tuple(extract_layers)

    def forward(self, x):
        # Matches PyTorch semantics exactly: abstract method.
        raise NotImplementedError("Subclasses should implement this method.")

    def forward_intermediates(self, x, indices=None, norm=True, stop_early=False,
                              intermediates_only=False):
        # Matches PyTorch semantics exactly: abstract method.
        raise NotImplementedError("Subclasses should implement this method.")

    def __call__(self, x):
        return self.forward(x)


# ----------------------------------------------------------------------------
# Pallas kernel: sequential elementwise stages, storing only requested stages.
# Scales / biases are baked in as immediates (trace-time specialization).
# ----------------------------------------------------------------------------
def _make_stages_kernel(out_stages: Tuple[int, ...],
                        scales: Tuple[float, ...],
                        biases: Tuple[float, ...]):
    out_stages = tuple(out_stages)
    max_stage = max(out_stages)

    def kernel(x_ref, *out_refs):
        h = x_ref[...].astype(jnp.float32)          # cast inside the kernel
        oi = 0
        for stage in range(1, max_stage + 1):       # static unroll
            h = jnp.tanh(h * scales[stage - 1] + biases[stage - 1])
            if stage in out_stages:                 # trace-time specialization
                out_refs[oi][...] = h.astype(out_refs[oi].dtype)
                oi += 1

    return kernel


@functools.partial(jax.jit,
                   static_argnames=("out_stages", "tile_r", "out_dtype", "scales", "biases"))
def _run_stages_slab(x_2d, *, out_stages, tile_r, out_dtype, scales, biases):
    """x_2d: (R, LANE) lane-dense slab; grid over rows, partial last block masked."""
    R, lane = x_2d.shape
    blk = pl.BlockSpec((tile_r, lane), lambda i: (i, 0))
    out_sd = tuple(jax.ShapeDtypeStruct((R, lane), out_dtype) for _ in out_stages)
    return pl.pallas_call(
        _make_stages_kernel(out_stages, scales, biases),
        out_shape=out_sd,
        grid=(pl.cdiv(R, tile_r),),
        in_specs=[blk],
        out_specs=tuple(blk for _ in out_stages),
        compiler_params=pltpu.CompilerParams(dimension_semantics=("parallel",)),
    )(x_2d)


@functools.partial(jax.jit,
                   static_argnames=("out_stages", "out_dtype", "scales", "biases"))
def _run_stages_whole(x, *, out_stages, out_dtype, scales, biases):
    """Native-shape, whole-array path for ragged totals that fit VMEM (no grid)."""
    out_sd = tuple(jax.ShapeDtypeStruct(x.shape, out_dtype) for _ in out_stages)
    return pl.pallas_call(
        _make_stages_kernel(out_stages, scales, biases),
        out_shape=out_sd,
    )(x)


def _pick_tile_r(rows: int, max_tile_rows: int) -> int:
    """Pick a sublane-aligned tile so the grid has >=2 steps when possible (v7x)."""
    if rows <= 8:
        return rows                              # single full-extent block
    half = -(-rows // 2)
    tile_r = -(-half // 8) * 8                   # round up to sublane multiple
    return max(8, min(tile_r, max_tile_rows))


def _padded_footprint_elems(shape) -> int:
    """Rough (8,128)-tiled element footprint of `shape` for the whole-array path."""
    if len(shape) == 0:
        return 8 * 128
    if len(shape) == 1:
        return 8 * (-(-shape[0] // 128) * 128)
    lead = math.prod(shape[:-2]) if len(shape) > 2 else 1
    sub = -(-shape[-2] // 8) * 8
    lan = -(-shape[-1] // 128) * 128
    return lead * sub * lan


class TinyPallasEncoder(BaseEncoder):
    """Minimal concrete encoder: 4 elementwise stages computed in one Pallas kernel."""

    def __init__(self, extract_layers: Union[Tuple[int], List[int]] = (1, 2, 3, 4),
                 *, lane: int = _LANE, max_tile_rows: int = _MAX_TILE_ROWS,
                 feature_dtype=jnp.bfloat16) -> None:
        super().__init__(extract_layers)
        assert lane % 128 == 0 and max_tile_rows % 8 == 0
        self.lane = int(lane)
        self.max_tile_rows = int(max_tile_rows)
        self.feature_dtype = feature_dtype
        # Deterministic synthetic parameters, baked into the kernel as immediates.
        self.scales = (1.0, 0.5, 1.5, 0.25)
        self.biases = (0.1, -0.1, 0.2, -0.2)

    # --- core: run only the stages we actually need ---
    def _encode(self, x, need_stages):
        need = tuple(sorted({int(s) for s in need_stages}))
        assert need and all(1 <= s <= NUM_LAYERS for s in need)

        shape = tuple(x.shape)
        total = math.prod(shape)
        lane = self.lane
        common = dict(out_stages=need, out_dtype=self.feature_dtype,
                      scales=self.scales, biases=self.biases)

        if total % lane == 0:
            # Lane-dense slab, no pad / no trim; partial last row-block is masked.
            rows = total // lane
            tile_r = _pick_tile_r(rows, self.max_tile_rows)
            outs = _run_stages_slab(x.reshape(rows, lane), tile_r=tile_r, **common)
            outs = [o.reshape(shape) for o in outs]
        elif _padded_footprint_elems(shape) * 4 * (1 + len(need)) <= _WHOLE_PATH_MAX_BYTES:
            # Ragged total but small: process at native shape -> zero wrapper copies.
            outs = list(_run_stages_whole(x, **common))
        else:
            # TODO(synk): large ragged totals still pay one pad copy + one trim copy
            # per extracted stage; an in-kernel tail mask (SMEM `total` scalar) would
            # remove them if a consumer ever hits this path at scale.
            rows = -(-total // lane)
            tile_r = _pick_tile_r(rows, self.max_tile_rows)
            flat = jnp.pad(x.reshape(-1), (0, rows * lane - total))
            outs = _run_stages_slab(flat.reshape(rows, lane), tile_r=tile_r, **common)
            outs = [o.reshape(-1)[:total].reshape(shape) for o in outs]
        return dict(zip(need, outs))

    def forward(self, x):
        # Return the intermediate features at `extract_layers` (1-indexed stages).
        feats = self._encode(x, self.extract_layers)
        return [feats[int(i)] for i in self.extract_layers]

    def forward_intermediates(self, x, indices=None, norm=True, stop_early=False,
                              intermediates_only=False):
        # TODO(synk): `norm` has no defined semantics in the abstract base; ignored.
        idx = tuple(indices) if indices is not None else self.extract_layers
        need = {int(i) for i in idx}
        final_stage = max(need) if stop_early else NUM_LAYERS
        if not intermediates_only:
            need.add(final_stage)
        feats = self._encode(x, tuple(need))
        intermediates = [feats[int(i)] for i in idx]
        if intermediates_only:
            return intermediates
        return feats[final_stage], intermediates


if __name__ == "__main__":
    # 1) Abstract-base semantics check (mirrors PyTorch exactly).
    base = BaseEncoder(extract_layers=(1, 2, 3, 4))
    assert base.extract_layers == (1, 2, 3, 4)
    for call in (lambda: base.forward(None), lambda: base.forward_intermediates(None)):
        try:
            call()
            raise AssertionError("BaseEncoder abstract methods should raise")
        except NotImplementedError:
            pass

    key = jax.random.PRNGKey(0)
    k1, k2, k3, k4 = jax.random.split(key, 4)

    def ref_stages(x, scales, biases):
        h = x.astype(jnp.float32)
        feats = []
        for s, b in zip(scales, biases):
            h = jnp.tanh(h * s + b)
            feats.append(h)
        return feats

    # 2) Default (bf16 features) encoder on lane-aligned (2, 4, 16, 16) NCHW input.
    enc = TinyPallasEncoder(extract_layers=(1, 2, 3, 4))
    x1 = jax.random.normal(k1, (2, 4, 16, 16), dtype=jnp.float32)
    refs1 = ref_stages(x1, enc.scales, enc.biases)
    outs = jax.block_until_ready(enc.forward(x1))
    for got, ref in zip(outs, refs1):
        assert got.shape == (2, 4, 16, 16) and got.dtype == jnp.bfloat16
        assert jnp.max(jnp.abs(got.astype(jnp.float32) - ref)) < 1e-2

    # 3) f32-feature flag path (tight tolerance).
    enc32 = TinyPallasEncoder((1, 2, 3, 4), feature_dtype=jnp.float32)
    outs32 = jax.block_until_ready(enc32.forward(x1))
    for got, ref in zip(outs32, refs1):
        assert got.dtype == jnp.float32
        assert jnp.max(jnp.abs(got - ref)) < 1e-5

    # Subset extraction: only stages 2 and 4 are stored by the kernel.
    final, inters = enc32.forward_intermediates(x1, indices=(2, 4))
    jax.block_until_ready((final, inters))
    assert len(inters) == 2
    assert jnp.max(jnp.abs(inters[0] - refs1[1])) < 1e-5
    assert jnp.max(jnp.abs(inters[1] - refs1[3])) < 1e-5
    assert jnp.max(jnp.abs(final - refs1[3])) < 1e-5

    # stop_early: compute only up to the max requested stage.
    final_se, inters_se = enc32.forward_intermediates(x1, indices=(2,), stop_early=True)
    jax.block_until_ready((final_se, inters_se))
    assert jnp.max(jnp.abs(final_se - refs1[1])) < 1e-5

    # 4) Ragged total (2*3*17*19 = 1938): native-shape whole-array path (no pad/trim).
    x2 = jax.random.normal(k2, (2, 3, 17, 19), dtype=jnp.float32)
    refs2 = ref_stages(x2, enc32.scales, enc32.biases)
    only3 = enc32.forward_intermediates(x2, indices=(3,), intermediates_only=True)
    jax.block_until_ready(only3)
    assert len(only3) == 1 and only3[0].shape == (2, 3, 17, 19)
    assert jnp.max(jnp.abs(only3[0] - refs2[2])) < 1e-5

    # 5) Multi-tile grid path (grid has >= 2 steps; default bf16 features).
    enc_small = TinyPallasEncoder((1, 2, 3, 4), max_tile_rows=8)
    x3 = jax.random.normal(k3, (2, 4, 32, 32), dtype=jnp.float32)  # 8192 elems -> 16 rows
    refs3 = ref_stages(x3, enc_small.scales, enc_small.biases)
    outs3 = jax.block_until_ready(enc_small.forward(x3))
    for got, ref in zip(outs3, refs3):
        assert jnp.max(jnp.abs(got.astype(jnp.float32) - ref)) < 1e-2

    # 6) Lane-aligned but rows % tile_r != 0: exercises the masked partial last block.
    x4 = jax.random.normal(k4, (3, 3, 512), dtype=jnp.float32)     # 4608 elems -> 9 rows
    refs4 = ref_stages(x4, enc32.scales, enc32.biases)
    outs4 = jax.block_until_ready(enc32.forward(x4))
    for got, ref in zip(outs4, refs4):
        assert got.shape == (3, 3, 512)
        assert jnp.max(jnp.abs(got - ref)) < 1e-5

    print("KERNEL_OK")
</pallas_src>

<mosaic_0001>
module attributes {stable_mosaic.version = 11 : i64} {
  func.func @kernel(%arg0: i32, %arg1: memref<4x512xf32, #tpu.memory_space<vmem>>, %arg2: memref<4x512xbf16, #tpu.memory_space<vmem>>, %arg3: memref<4x512xbf16, #tpu.memory_space<vmem>>, %arg4: memref<4x512xbf16, #tpu.memory_space<vmem>>, %arg5: memref<4x512xbf16, #tpu.memory_space<vmem>>) attributes {dimension_semantics = [#tpu.dimension_semantics<parallel>], iteration_bounds = array<i64: 1>, scalar_prefetch = 0 : i64, scratch_operands = 0 : i64, tpu.core_type = #tpu.core_type<tc>, window_params = [{transform_indices = @transform_0, window_bounds = array<i64: 4, 512>}, {transform_indices = @transform_1, window_bounds = array<i64: 4, 512>}, {transform_indices = @transform_2, window_bounds = array<i64: 4, 512>}, {transform_indices = @transform_3, window_bounds = array<i64: 4, 512>}, {transform_indices = @transform_4, window_bounds = array<i64: 4, 512>}]} {
    %c0 = arith.constant 0 : index
    %c0_0 = arith.constant 0 : index
    %0 = vector.load %arg1[%c0, %c0_0] : memref<4x512xf32, #tpu.memory_space<vmem>>, vector<4x512xf32>
    %cst = arith.constant 1.000000e+00 : f32
    %1 = vector.broadcast %cst : f32 to vector<4x512xf32>
    %2 = arith.mulf %0, %1 : vector<4x512xf32>
    %cst_1 = arith.constant 1.000000e-01 : f32
    %3 = vector.broadcast %cst_1 : f32 to vector<4x512xf32>
    %4 = arith.addf %2, %3 : vector<4x512xf32>
    %5 = math.tanh %4 : vector<4x512xf32>
    %6 = arith.truncf %5 : vector<4x512xf32> to vector<4x512xbf16>
    %c0_2 = arith.constant 0 : index
    %c0_3 = arith.constant 0 : index
    %7 = vector.load %arg2[%c0_2, %c0_3] : memref<4x512xbf16, #tpu.memory_space<vmem>>, vector<4x512xbf16>
    tpu.vector_store %arg2[%c0_2, %c0_3], %6 {strides = array<i32>} : memref<4x512xbf16, #tpu.memory_space<vmem>>, vector<4x512xbf16>,
    %cst_4 = arith.constant 5.000000e-01 : f32
    %8 = vector.broadcast %cst_4 : f32 to vector<4x512xf32>
    %9 = arith.mulf %5, %8 : vector<4x512xf32>
    %cst_5 = arith.constant -1.000000e-01 : f32
    %10 = vector.broadcast %cst_5 : f32 to vector<4x512xf32>
    %11 = arith.addf %9, %10 : vector<4x512xf32>
    %12 = math.tanh %11 : vector<4x512xf32>
    %13 = arith.truncf %12 : vector<4x512xf32> to vector<4x512xbf16>
    %c0_6 = arith.constant 0 : index
    %c0_7 = arith.constant 0 : index
    %14 = vector.load %arg3[%c0_6, %c0_7] : memref<4x512xbf16, #tpu.memory_space<vmem>>, vector<4x512xbf16>
    tpu.vector_store %arg3[%c0_6, %c0_7], %13 {strides = array<i32>} : memref<4x512xbf16, #tpu.memory_space<vmem>>, vector<4x512xbf16>,
    %cst_8 = arith.constant 1.500000e+00 : f32
    %15 = vector.broadcast %cst_8 : f32 to vector<4x512xf32>
    %16 = arith.mulf %12, %15 : vector<4x512xf32>
    %cst_9 = arith.constant 2.000000e-01 : f32
    %17 = vector.broadcast %cst_9 : f32 to vector<4x512xf32>
    %18 = arith.addf %16, %17 : vector<4x512xf32>
    %19 = math.tanh %18 : vector<4x512xf32>
    %20 = arith.truncf %19 : vector<4x512xf32> to vector<4x512xbf16>
    %c0_10 = arith.constant 0 : index
    %c0_11 = arith.constant 0 : index
    %21 = vector.load %arg4[%c0_10, %c0_11] : memref<4x512xbf16, #tpu.memory_space<vmem>>, vector<4x512xbf16>
    tpu.vector_store %arg4[%c0_10, %c0_11], %20 {strides = array<i32>} : memref<4x512xbf16, #tpu.memory_space<vmem>>, vector<4x512xbf16>,
    %cst_12 = arith.constant 2.500000e-01 : f32
    %22 = vector.broadcast %cst_12 : f32 to vector<4x512xf32>
    %23 = arith.mulf %19, %22 : vector<4x512xf32>
    %cst_13 = arith.constant -2.000000e-01 : f32
    %24 = vector.broadcast %cst_13 : f32 to vector<4x512xf32>
    %25 = arith.addf %23, %24 : vector<4x512xf32>
    %26 = math.tanh %25 : vector<4x512xf32>
    %27 = arith.truncf %26 : vector<4x512xf32> to vector<4x512xbf16>
    %c0_14 = arith.constant 0 : index
    %c0_15 = arith.constant 0 : index
    %28 = vector.load %arg5[%c0_14, %c0_15] : memref<4x512xbf16, #tpu.memory_space<vmem>>, vector<4x512xbf16>
    tpu.vector_store %arg5[%c0_14, %c0_15], %27 {strides = array<i32>} : memref<4x512xbf16, #tpu.memory_space<vmem>>, vector<4x512xbf16>,
    return
  }
  func.func @transform_0(%arg0: i32) -> (i32, i32) {
    %c0_i32 = arith.constant 0 : i32
    %c0_i32_0 = arith.constant 0 : i32
    return %arg0, %c0_i32 : i32, i32
  }
  func.func @transform_1(%arg0: i32) -> (i32, i32) {
    %c0_i32 = arith.constant 0 : i32
    %c0_i32_0 = arith.constant 0 : i32
    return %arg0, %c0_i32 : i32, i32
  }
  func.func @transform_2(%arg0: i32) -> (i32, i32) {
    %c0_i32 = arith.constant 0 : i32
    %c0_i32_0 = arith.constant 0 : i32
    return %arg0, %c0_i32 : i32, i32
  }
  func.func @transform_3(%arg0: i32) -> (i32, i32) {
    %c0_i32 = arith.constant 0 : i32
    %c0_i32_0 = arith.constant 0 : i32
    return %arg0, %c0_i32 : i32, i32
  }
  func.func @transform_4(%arg0: i32) -> (i32, i32) {
    %c0_i32 = arith.constant 0 : i32
    %c0_i32_0 = arith.constant 0 : i32
    return %arg0, %c0_i32 : i32, i32
  }
}

</mosaic_0001>

<llo_original>
// kernel: _run_stages_slab.1
$region0: #{_run_stages_slab.1}
  #allocation0 [shape = 'u32[]', space=smem, size = 0x4, offset = 0x4, fixed_abs, tag = 'smem constant byte address 0x4 - core index']
  #allocation1 [shape = 'u32[144,128]{1,0:T(1,128)}', space=vmem, size = 0x12000, scoped, tag = 'internal scratch']
  %s0 = inlined_call_operand.hbm [shape: f32[4,512], index: 0, kind: input, shape index: {}]
  %s1 = inlined_call_operand.hbm [shape: bf16[4,512], index: 1, kind: output, shape index: {0}]
  %s2 = inlined_call_operand.hbm [shape: bf16[4,512], index: 2, kind: output, shape index: {1}]
  %s3 = inlined_call_operand.hbm [shape: bf16[4,512], index: 3, kind: output, shape index: {2}]
  %s4 = inlined_call_operand.hbm [shape: bf16[4,512], index: 4, kind: output, shape index: {3}]
  %5 = xla_tuple %s1, %s2, %s3, %s4
  %s6 = sld [smem:[#allocation0]]
  $region42: #{_run_stages_slab.1} parent=0
    _
  %s8 = ssub.s32 1, %s6
  %s9 = scalar_select 0, %s8, %s6
  $region1: #{_run_stages_slab.1} parent=0
    #allocation2 [shape = 'u8[8192]{0}', space=vmem, size = 0x2000, scoped, tag = 'input window, operand 0, single buffered']
    #allocation3 [shape = 's32[1]{0}', space=sflag, size = 0x4, scoped, tag = 'scoped memory for _run_stages_slab.1']
    #allocation4 [shape = 's32[1]{0}', space=sflag, size = 0x4, scoped, tag = 'scoped memory for _run_stages_slab.1']
    #allocation5 [shape = 'u8[4096]{0}', space=vmem, size = 0x1000, scoped, tag = 'output window, operand 0, single buffered']
    #allocation6 [shape = 'u8[4096]{0}', space=vmem, size = 0x1000, scoped, tag = 'output window, operand 1, single buffered']
    #allocation7 [shape = 's32[1]{0}', space=sflag, size = 0x4, scoped, tag = 'scoped memory for _run_stages_slab.1']
    #allocation8 [shape = 'u8[4096]{0}', space=vmem, size = 0x1000, scoped, tag = 'output window, operand 2, single buffered']
    #allocation9 [shape = 'u8[4096]{0}', space=vmem, size = 0x1000, scoped, tag = 'output window, operand 3, single buffered']
    #allocation10 [shape = 's32[1]{0}', space=sflag, size = 0x4, scoped, tag = 'scoped memory for _run_stages_slab.1']
    %10 = vsyncpa [#allocation3], 0
    %11 = vsyncpa [#allocation4], 0
    %12 = vsyncpa [#allocation7], 0
    %13 = vsyncpa [#allocation10], 0
    // Predicated region
    $region2: #{_run_stages_slab.1} parent=1 // pred_check
      _
    $region3: #{_run_stages_slab.1} parent=1 // pred_check_branch
      %15 = sbr.rel (0) target = $region5
    $region4: #{_run_stages_slab.1} parent=1 // pred_region
      %s17 = ssub.s32 256, 256
      %18 = vsyncadd [#allocation3], %s17
      %s20 = sshll.u32 [#allocation2], 4
      %s21 = int_to_ptr.vmem [resolvable:$true] %s20
      %23 = dma.hbm_to_vmem [thread:$0]  %s0, 256, %s21, [#allocation3]
    $region5: #{_run_stages_slab.1} parent=1 // pred_fallthru
      _
    // Predicated region
    $region6: #{_run_stages_slab.1} parent=1 // pred_check
      _
    $region7: #{_run_stages_slab.1} parent=1 // pred_check_branch
      %25 = sbr.rel (0) target = $region9
    $region8: #{_run_stages_slab.1} parent=1 // pred_region
      %26 = dma.done [#allocation3], 256
    $region9: #{_run_stages_slab.1} parent=1 // pred_fallthru
      _
    %v27 = vld [vmem:[#allocation2] sm:$0xff]
    %v28 = vld [vmem:[#allocation2 + $0x8] sm:$0xff]
    %v29 = vadd.f32 %v27, 0.1
    %v30 = vadd.f32 %v28, 0.1
    %v31 = vtanh.pop %v29
    %v32 = vtanh.pop %v30
    %v35 = vcombine.high %v31, %v31
    %v36 = vcombine.high %v32, %v32
    %v39 = vpack.c.bf16 %v31, %v31
    %v40 = vpack.c.bf16 %v35, %v35
    %v41 = vpack.c.bf16 %v32, %v32
    %v42 = vpack.c.bf16 %v36, %v36
    %v47 = vcombine.low %v39, %v40
    %v48 = vcombine.low %v41, %v42
    %v50 = vunpack.c.l.s4 1983009808
    %v51 = vunpack.c.0.s8 %v50
    %v52 = vlaneseq
    %v53 = vshrl.u32 %v52, 7
    %v54 = vsub.s32 %v51, %v53
    %v55 = vrot.slane %v47, %v54
    %v57 = vunpack.c.l.s4 1983009808
    %v58 = vunpack.c.0.s8 %v57
    %v59 = vlaneseq
    %v60 = vshrl.u32 %v59, 7
    %v61 = vsub.s32 %v58, %v60
    %v62 = vrot.slane %v48, %v61
    %v63 = vcombine.low %v55, %v62
    %65 = vst [vmem:[#allocation5] sm:$0xff] %v63
    %v66 = vmul.f32 %v31, 0.5
    %v67 = vmul.f32 %v32, 0.5
    %v68 = vadd.f32 %v66, -0.1
    %v69 = vadd.f32 %v67, -0.1
    %v70 = vtanh.pop %v68
    %v71 = vtanh.pop %v69
    %v74 = vcombine.high %v70, %v70
    %v75 = vcombine.high %v71, %v71
    %v78 = vpack.c.bf16 %v70, %v70
    %v79 = vpack.c.bf16 %v74, %v74
    %v80 = vpack.c.bf16 %v71, %v71
    %v81 = vpack.c.bf16 %v75, %v75
    %v86 = vcombine.low %v78, %v79
    %v87 = vcombine.low %v80, %v81
    %v89 = vunpack.c.l.s4 1983009808
    %v90 = vunpack.c.0.s8 %v89
    %v91 = vlaneseq
    %v92 = vshrl.u32 %v91, 7
    %v93 = vsub.s32 %v90, %v92
    %v94 = vrot.slane %v86, %v93
    %v96 = vunpack.c.l.s4 1983009808
    %v97 = vunpack.c.0.s8 %v96
    %v98 = vlaneseq
    %v99 = vshrl.u32 %v98, 7
    %v100 = vsub.s32 %v97, %v99
    %v101 = vrot.slane %v87, %v100
    %v102 = vcombine.low %v94, %v101
    %104 = vst [vmem:[#allocation6] sm:$0xff] %v102
    %v105 = vmul.f32 %v70, 1.5
    %v106 = vmul.f32 %v71, 1.5
    %v107 = vadd.f32 %v105, 0.2
    %v108 = vadd.f32 %v106, 0.2
    %v109 = vtanh.pop %v107
    %v110 = vtanh.pop %v108
    %v113 = vcombine.high %v109, %v109
    %v114 = vcombine.high %v110, %v110
    %v117 = vpack.c.bf16 %v109, %v109
    %v118 = vpack.c.bf16 %v113, %v113
    %v119 = vpack.c.bf16 %v110, %v110
    %v120 = vpack.c.bf16 %v114, %v114
    %v125 = vcombine.low %v117, %v118
    %v126 = vcombine.low %v119, %v120
    %v128 = vunpack.c.l.s4 1983009808
    %v129 = vunpack.c.0.s8 %v128
    %v130 = vlaneseq
    %v131 = vshrl.u32 %v130, 7
    %v132 = vsub.s32 %v129, %v131
    %v133 = vrot.slane %v125, %v132
    %v135 = vunpack.c.l.s4 1983009808
    %v136 = vunpack.c.0.s8 %v135
    %v137 = vlaneseq
    %v138 = vshrl.u32 %v137, 7
    %v139 = vsub.s32 %v136, %v138
    %v140 = vrot.slane %v126, %v139
    %v141 = vcombine.low %v133, %v140
    %143 = vst [vmem:[#allocation8] sm:$0xff] %v141
    %v144 = vmul.f32 %v109, 0.25
    %v145 = vmul.f32 %v110, 0.25
    %v146 = vadd.f32 %v144, -0.2
    %v147 = vadd.f32 %v145, -0.2
    %v148 = vtanh.pop %v146
    %v149 = vtanh.pop %v147
    %v152 = vcombine.high %v148, %v148
    %v153 = vcombine.high %v149, %v149
    %v156 = vpack.c.bf16 %v148, %v148
    %v157 = vpack.c.bf16 %v152, %v152
    %v158 = vpack.c.bf16 %v149, %v149
    %v159 = vpack.c.bf16 %v153, %v153
    %v164 = vcombine.low %v156, %v157
    %v165 = vcombine.low %v158, %v159
    %v167 = vunpack.c.l.s4 1983009808
    %v168 = vunpack.c.0.s8 %v167
    %v169 = vlaneseq
    %v170 = vshrl.u32 %v169, 7
    %v171 = vsub.s32 %v168, %v170
    %v172 = vrot.slane %v164, %v171
    %v174 = vunpack.c.l.s4 1983009808
    %v175 = vunpack.c.0.s8 %v174
    %v176 = vlaneseq
    %v177 = vshrl.u32 %v176, 7
    %v178 = vsub.s32 %v175, %v177
    %v179 = vrot.slane %v165, %v178
    %v180 = vcombine.low %v172, %v179
    %182 = vst [vmem:[#allocation9] sm:$0xff] %v180
    // Predicated region
    $region10: #{_run_stages_slab.1} parent=1 // pred_check
      _
    $region11: #{_run_stages_slab.1} parent=1 // pred_check_branch
      %184 = sbr.rel (0) target = $region13
    $region12: #{_run_stages_slab.1} parent=1 // pred_region
      %s186 = ssub.s32 128, 128
      %187 = vsyncadd [#allocation4], %s186
      %s189 = sshll.u32 [#allocation5], 4
      %s190 = int_to_ptr.vmem [resolvable:$true] %s189
      %192 = dma.vmem_to_hbm [thread:$0]  %s190, 128, %s1, [#allocation4]
    $region13: #{_run_stages_slab.1} parent=1 // pred_fallthru
      _
    // Predicated region
    $region14: #{_run_stages_slab.1} parent=1 // pred_check
      _
    $region15: #{_run_stages_slab.1} parent=1 // pred_check_branch
      %194 = sbr.rel (0) target = $region17
    $region16: #{_run_stages_slab.1} parent=1 // pred_region
      %s196 = ssub.s32 128, 128
      %197 = vsyncadd [#allocation7], %s196
      %s199 = sshll.u32 [#allocation6], 4
      %s200 = int_to_ptr.vmem [resolvable:$true] %s199
      %202 = dma.vmem_to_hbm [thread:$0]  %s200, 128, %s2, [#allocation7]
    $region17: #{_run_stages_slab.1} parent=1 // pred_fallthru
      _
    // Predicated region
    $region18: #{_run_stages_slab.1} parent=1 // pred_check
      _
    $region19: #{_run_stages_slab.1} parent=1 // pred_check_branch
      %204 = sbr.rel (0) target = $region21
    $region20: #{_run_stages_slab.1} parent=1 // pred_region
      %s206 = ssub.s32 128, 128
      %207 = vsyncadd [#allocation7], %s206
      %s209 = sshll.u32 [#allocation8], 4
      %s210 = int_to_ptr.vmem [resolvable:$true] %s209
      %212 = dma.vmem_to_hbm [thread:$0]  %s210, 128, %s3, [#allocation7]
    $region21: #{_run_stages_slab.1} parent=1 // pred_fallthru
      _
    // Predicated region
    $region22: #{_run_stages_slab.1} parent=1 // pred_check
      _
    $region23: #{_run_stages_slab.1} parent=1 // pred_check_branch
      %214 = sbr.rel (0) target = $region25
    $region24: #{_run_stages_slab.1} parent=1 // pred_region
      %s216 = ssub.s32 128, 128
      %217 = vsyncadd [#allocation10], %s216
      %s219 = sshll.u32 [#allocation9], 4
      %s220 = int_to_ptr.vmem [resolvable:$true] %s219
      %222 = dma.vmem_to_hbm [thread:$0]  %s220, 128, %s4, [#allocation10]
    $region25: #{_run_stages_slab.1} parent=1 // pred_fallthru
      _
    // Predicated region
    $region26: #{_run_stages_slab.1} parent=1 // pred_check
      _
    $region27: #{_run_stages_slab.1} parent=1 // pred_check_branch
      %224 = sbr.rel (0) target = $region29
    $region28: #{_run_stages_slab.1} parent=1 // pred_region
      %225 = dma.done [#allocation4], 128
    $region29: #{_run_stages_slab.1} parent=1 // pred_fallthru
      _
    // Predicated region
    $region30: #{_run_stages_slab.1} parent=1 // pred_check
      _
    $region31: #{_run_stages_slab.1} parent=1 // pred_check_branch
      %227 = sbr.rel (0) target = $region33
    $region32: #{_run_stages_slab.1} parent=1 // pred_region
      %228 = dma.done [#allocation7], 128
    $region33: #{_run_stages_slab.1} parent=1 // pred_fallthru
      _
    // Predicated region
    $region34: #{_run_stages_slab.1} parent=1 // pred_check
      _
    $region35: #{_run_stages_slab.1} parent=1 // pred_check_branch
      %230 = sbr.rel (0) target = $region37
    $region36: #{_run_stages_slab.1} parent=1 // pred_region
      %231 = dma.done [#allocation7], 128
    $region37: #{_run_stages_slab.1} parent=1 // pred_fallthru
      _
    // Predicated region
    $region38: #{_run_stages_slab.1} parent=1 // pred_check
      _
    $region39: #{_run_stages_slab.1} parent=1 // pred_check_branch
      %233 = sbr.rel (0) target = $region41
    $region40: #{_run_stages_slab.1} parent=1 // pred_region
      %234 = dma.done [#allocation10], 128
    $region41: #{_run_stages_slab.1} parent=1 // pred_fallthru
      _
    %235 = vsyncpa [#allocation3], 1
    %236 = vsyncpa [#allocation4], 1
    %237 = vsyncpa [#allocation7], 1
    %238 = vsyncpa [#allocation10], 1

</llo_original>
